<compile_context>
chip_gen: v5e
topology: v5e:2x2
jax: 0.10.0
libtpu: 0.0.40
codegen_flags: <defaults>
</compile_context>

<pallas_src>
import functools
import math

import numpy as np
import jax
import jax.numpy as jnp
from jax import lax
from jax.experimental import pallas as pl
from jax.experimental.pallas import tpu as pltpu


# ----------------------------------------------------------------------------
# Cayley-Dickson component table (plain numpy glue, deterministic)
# ----------------------------------------------------------------------------
def _cd_conj(z):
    out = np.array(z, dtype=np.float64)
    if out.shape[0] > 1:
        out[1:] = -out[1:]
    return out


def _cd_mult(u, v):
    u = np.asarray(u, dtype=np.float64)
    v = np.asarray(v, dtype=np.float64)
    n = u.shape[0]
    if n == 1:
        return u * v
    m = n // 2
    a, b = u[:m], u[m:]
    c, d = v[:m], v[m:]
    left = _cd_mult(a, c) - _cd_mult(_cd_conj(d), b)
    right = _cd_mult(d, a) + _cd_mult(b, _cd_conj(c))
    return np.concatenate([left, right])


def get_comp_mat(num_components=8):
    """M[c, b] = signed a such that e_a * e_b = sign * e_c."""
    N = num_components
    M = np.zeros((N, N), dtype=np.int64)
    for b in range(N):
        eb = np.zeros(N); eb[b] = 1.0
        for a in range(N):
            ea = np.zeros(N); ea[a] = 1.0
            prod = _cd_mult(ea, eb)
            c = int(np.argmax(np.abs(prod)))
            s = 1 if prod[c] >= 0 else -1
            M[c, b] = s * a
    return M


# ----------------------------------------------------------------------------
# Parameter construction: fold the 8 component convs into one big block conv
# ----------------------------------------------------------------------------
def build_hyper_params(in_channels, out_channels, kernel_size, num_components,
                       key):
    N = num_components
    assert in_channels % N == 0 and out_channels % N == 0   # check_input
    in_c = in_channels // N
    out_c = out_channels // N
    KH, KW = kernel_size
    fan_in = in_c * KH * KW
    bound = 1.0 / math.sqrt(fan_in)

    keys = jax.random.split(key, 2 * N)
    Ws = [jax.random.uniform(keys[a], (out_c, in_c, KH, KW),
                             minval=-bound, maxval=bound, dtype=jnp.float32)
          for a in range(N)]
    bs = [jax.random.uniform(keys[N + a], (out_c,),
                             minval=-bound, maxval=bound, dtype=jnp.float32)
          for a in range(N)]

    comp = get_comp_mat(N)
    rows, brows = [], []
    for c in range(N):
        blocks = []
        bsum = jnp.zeros((out_c,), jnp.float32)
        for b in range(N):
            a = int(abs(comp[c, b]))
            s = 1.0 if comp[c, b] >= 0 else -1.0
            blocks.append(s * Ws[a])
            bsum = bsum + s * bs[a]
        rows.append(jnp.concatenate(blocks, axis=1))   # concat over in channels
        brows.append(bsum)
    Wbig = jnp.concatenate(rows, axis=0)               # (Cout, Cin, KH, KW)
    bbig = jnp.concatenate(brows, axis=0)              # (Cout,)
    return Wbig, bbig


# ----------------------------------------------------------------------------
# Pallas kernel: folded-K (T*Cin) matmul over lane-dense q tiles
# ----------------------------------------------------------------------------
def _hyperconv_kernel(xc_ref, xn_ref, w_ref, b_ref, o_ref, xs_ref, *,
                      tap_offsets, cin, q_tile):
    """xc_ref: (Cin, q_tile)        bf16  current flat-image tile
       xn_ref: (Cin, q_tile)        bf16  next tile (static halo source)
       w_ref : (co_tile, T*Cin)     bf16  folded hypercomplex weights
       b_ref : (co_tile, 1)         f32   folded bias
       o_ref : (co_tile, q_tile)    bf16  lane-dense output tile
       xs_ref: (T*Cin, q_tile)      bf16  stacked MXU operand (scratch)
    """
    # Build the stacked operand once per (b, q) tile; reuse across Cout tiles.
    @pl.when(pl.program_id(2) == 0)
    def _build_stacked():
        for t, off in enumerate(tap_offsets):           # static unrolled, T small
            r0 = t * cin
            if off == 0:
                xs_ref[r0:r0 + cin, :] = xc_ref[...]
            else:
                xs_ref[r0:r0 + cin, :q_tile - off] = xc_ref[:, off:]
                xs_ref[r0:r0 + cin, q_tile - off:] = xn_ref[:, :off]

    acc = jnp.dot(w_ref[...], xs_ref[...], preferred_element_type=jnp.float32)
    o_ref[...] = (acc + b_ref[...]).astype(o_ref.dtype)   # f32 bias, bf16 store


def hyperconv_forward(x_nchw, Wbig, bbig, stride=(1, 1), padding=(0, 0),
                      dilation=(1, 1), q_tile=None, cout_tile=None):
    B, Cin, H, W = x_nchw.shape
    Cout, Cin_w, KH, KW = Wbig.shape
    assert Cin_w == Cin
    sh, sw = stride
    ph, pw = padding
    dh, dw = dilation

    Hp, Wp = H + 2 * ph, W + 2 * pw
    Ho = (Hp - (dh * (KH - 1) + 1)) // sh + 1
    Wo = (Wp - (dw * (KW - 1) + 1)) // sw + 1
    H_ext = (Ho - 1) * sh + 1          # extended output rows (stride sliced later)
    Q = H_ext * Wp                     # lane-dense flat output width
    T = KH * KW
    TK = T * Cin
    tap_offsets = tuple(i * dh * Wp + j * dw for i in range(KH) for j in range(KW))
    max_off = max(tap_offsets)

    def _rup(a, m):
        return (a + m - 1) // m * m

    # ---- tile selection ------------------------------------------------------
    if q_tile is None:
        q_tile = min(512, _rup(Q, 128))
    q_tile = max(_rup(q_tile, 128), _rup(max_off + 1, 128))
    n_q = -(-Q // q_tile)
    if cout_tile is None:
        cout_tile = Cout if Cout <= 256 else 128
    assert Cout % cout_tile == 0 and cout_tile % 8 == 0
    n_co = Cout // cout_tile

    # ---- single fused pad: conv padding + flat tail (extra zero rows) -------
    L_total = (n_q + 1) * q_tile              # n_q current tiles + trailing halo block
    extra_rows = -(-max(L_total - Hp * Wp, 0) // Wp)
    xpad = jnp.pad(x_nchw.astype(jnp.bfloat16),
                   ((0, 0), (0, 0), (ph, ph + extra_rows), (pw, pw)))
    x_flat = xpad.reshape(B, Cin, (Hp + extra_rows) * Wp)   # >= L_total wide

    # folded weight (Cout, T*Cin) with row order matching the stacked operand
    w_folded = (Wbig.transpose(0, 2, 3, 1)     # (Cout, KH, KW, Cin)
                    .reshape(Cout, TK)
                    .astype(jnp.bfloat16))
    bias_col = bbig.reshape(Cout, 1).astype(jnp.float32)

    kernel = functools.partial(_hyperconv_kernel, tap_offsets=tap_offsets,
                               cin=Cin, q_tile=q_tile)

    flops = 2 * B * Cout * TK * n_q * q_tile
    bytes_accessed = int(2 * x_flat.size * 2                # cur + next reads
                         + B * n_q * n_co * w_folded.size * 2
                         + B * Cout * n_q * q_tile * 2      # bf16 writeback
                         + bias_col.size * 4)
    vmem_bytes = (2 * (2 * Cin * q_tile * 2)                # x cur/next, dbl-buffered
                  + 2 * (cout_tile * TK * 2 + cout_tile * 4)
                  + 2 * (cout_tile * q_tile * 2)            # bf16 out, dbl-buffered
                  + TK * q_tile * 2                         # stacked scratch
                  + (2 << 20))
    vmem_bytes = int(min(max(vmem_bytes, 8 << 20), 64 << 20))

    out_ext = pl.pallas_call(
        kernel,
        out_shape=jax.ShapeDtypeStruct((B, Cout, n_q * q_tile), jnp.bfloat16),
        grid_spec=pltpu.PrefetchScalarGridSpec(
            num_scalar_prefetch=0,
            grid=(B, n_q, n_co),
            in_specs=[
                pl.BlockSpec((None, Cin, q_tile), lambda b, q, c: (b, 0, q)),
                pl.BlockSpec((None, Cin, q_tile), lambda b, q, c: (b, 0, q + 1)),
                # TODO(synk): pipeline_mode=pl.Buffered(1) on these two
                # grid-invariant specs once verified on the target jax version.
                pl.BlockSpec((cout_tile, TK), lambda b, q, c: (c, 0)),
                pl.BlockSpec((cout_tile, 1), lambda b, q, c: (c, 0)),
            ],
            out_specs=pl.BlockSpec((None, cout_tile, q_tile),
                                   lambda b, q, c: (b, c, q)),
            scratch_shapes=[pltpu.VMEM((TK, q_tile), jnp.bfloat16)],
        ),
        compiler_params=pltpu.CompilerParams(
            dimension_semantics=("parallel", "parallel", "arbitrary"),
            vmem_limit_bytes=vmem_bytes),
        cost_estimate=pl.CostEstimate(flops=flops, transcendentals=0,
                                      bytes_accessed=bytes_accessed),
    )(x_flat, x_flat, w_folded, bias_col)

    # Output is channel-major already: slice valid columns, cast back to f32
    # (fuses with the slice), undo the flat/extended layout, stride-slice.
    out = out_ext[:, :, :Q].astype(jnp.float32).reshape(B, Cout, H_ext, Wp)
    out = out[:, :, ::sh, ::sw][:, :, :Ho, :Wo]
    return out


# ----------------------------------------------------------------------------
# Demo + check
# ----------------------------------------------------------------------------
if __name__ == "__main__":
    # HyperConv(in_channels=16, out_channels=16, kernel_size=3, stride=1,
    #           padding=1, num_components=8, bias=True, operation='conv2d')
    B, Cin, Cout, H, W = 2, 16, 16, 16, 16
    N = 8
    ksize = (3, 3)
    stride, padding, dilation = (1, 1), (1, 1), (1, 1)

    key = jax.random.PRNGKey(0)
    kw_, kx_ = jax.random.split(key)
    Wbig, bbig = build_hyper_params(Cin, Cout, ksize, N, kw_)
    x = jax.random.normal(kx_, (B, Cin, H, W), dtype=jnp.float32)

    # q_tile=128 exercises the multi-tile pipeline and the static halo
    # stitching at demo scale; use the default (512-lane target) at real sizes.
    fwd = jax.jit(functools.partial(hyperconv_forward, stride=stride,
                                    padding=padding, dilation=dilation,
                                    q_tile=128))
    y = jax.block_until_ready(fwd(x, Wbig, bbig))

    # Pure-JAX reference: folded big conv (== HyperConv forward semantics),
    # on the same bf16-rounded operands the kernel feeds the MXU, f32 accum.
    x_bf = x.astype(jnp.bfloat16).astype(jnp.float32)
    W_bf = Wbig.astype(jnp.bfloat16).astype(jnp.float32)
    ref = lax.conv_general_dilated(
        x_bf, W_bf, window_strides=stride,
        padding=((padding[0], padding[0]), (padding[1], padding[1])),
        rhs_dilation=dilation,
        dimension_numbers=("NCHW", "OIHW", "NCHW"),
    ) + bbig[None, :, None, None]

    assert y.shape == (B, Cout, H, W), y.shape
    # Kernel stores bf16 output -> slightly looser tolerance than f32-out.
    np.testing.assert_allclose(np.asarray(y), np.asarray(ref),
                               rtol=3e-2, atol=3e-2)

    # Also check the default auto-tiling path (single 384-lane q tile here).
    fwd2 = jax.jit(functools.partial(hyperconv_forward, stride=stride,
                                     padding=padding, dilation=dilation))
    y2 = jax.block_until_ready(fwd2(x, Wbig, bbig))
    np.testing.assert_allclose(np.asarray(y2), np.asarray(ref),
                               rtol=3e-2, atol=3e-2)
    print("KERNEL_OK")
</pallas_src>

<mosaic_0001>
module attributes {stable_mosaic.version = 11 : i64} {
  func.func @_hyperconv_kernel(%arg0: i32, %arg1: i32, %arg2: i32, %arg3: memref<1x16x128xbf16, #tpu.memory_space<vmem>>, %arg4: memref<1x16x128xbf16, #tpu.memory_space<vmem>>, %arg5: memref<16x144xbf16, #tpu.memory_space<vmem>>, %arg6: memref<16x1xf32, #tpu.memory_space<vmem>>, %arg7: memref<1x16x128xbf16, #tpu.memory_space<vmem>>, %arg8: memref<144x128xbf16, #tpu.memory_space<vmem>>) attributes {dimension_semantics = [#tpu.dimension_semantics<parallel>, #tpu.dimension_semantics<parallel>, #tpu.dimension_semantics<arbitrary>], iteration_bounds = array<i64: 2, 3, 1>, scalar_prefetch = 0 : i64, scratch_operands = 1 : i64, tpu.core_type = #tpu.core_type<tc>, window_params = [{transform_indices = @transform_0, window_bounds = array<i64: 1, 16, 128>}, {transform_indices = @transform_1, window_bounds = array<i64: 1, 16, 128>}, {transform_indices = @transform_2, window_bounds = array<i64: 16, 144>}, {transform_indices = @transform_3, window_bounds = array<i64: 16, 1>}, {transform_indices = @transform_4, window_bounds = array<i64: 1, 16, 128>}]} {
    %c0_i32 = arith.constant 0 : i32
    %0 = arith.cmpi eq, %arg2, %c0_i32 : i32
    %1 = arith.extui %0 : i1 to i32
    %c0_i32_0 = arith.constant 0 : i32
    %2 = arith.cmpi ne, %1, %c0_i32_0 : i32
    scf.if %2 {
      %c0_9 = arith.constant 0 : index
      %c0_10 = arith.constant 0 : index
      %c0_11 = arith.constant 0 : index
      %13 = vector.load %arg3[%c0_9, %c0_10, %c0_11] : memref<1x16x128xbf16, #tpu.memory_space<vmem>>, vector<1x16x128xbf16>
      %14 = vector.shape_cast %13 : vector<1x16x128xbf16> to vector<16x128xbf16>
      %c0_12 = arith.constant 0 : index
      %c0_13 = arith.constant 0 : index
      %15 = vector.load %arg8[%c0_12, %c0_13] : memref<144x128xbf16, #tpu.memory_space<vmem>>, vector<16x128xbf16>
      tpu.vector_store %arg8[%c0_12, %c0_13], %14 {strides = array<i32>} : memref<144x128xbf16, #tpu.memory_space<vmem>>, vector<16x128xbf16>,
      %c0_14 = arith.constant 0 : index
      %c0_15 = arith.constant 0 : index
      %c1 = arith.constant 1 : index
      %16 = vector.load %arg3[%c0_14, %c0_15, %c1] : memref<1x16x128xbf16, #tpu.memory_space<vmem>>, vector<1x16x127xbf16>
      %17 = vector.shape_cast %16 : vector<1x16x127xbf16> to vector<16x127xbf16>
      %c16 = arith.constant 16 : index
      %c0_16 = arith.constant 0 : index
      %18 = vector.load %arg8[%c16, %c0_16] : memref<144x128xbf16, #tpu.memory_space<vmem>>, vector<16x127xbf16>
      tpu.vector_store %arg8[%c16, %c0_16], %17 {strides = array<i32>} : memref<144x128xbf16, #tpu.memory_space<vmem>>, vector<16x127xbf16>,
      %c0_17 = arith.constant 0 : index
      %c0_18 = arith.constant 0 : index
      %c0_19 = arith.constant 0 : index
      %19 = vector.load %arg4[%c0_17, %c0_18, %c0_19] : memref<1x16x128xbf16, #tpu.memory_space<vmem>>, vector<1x16x1xbf16>
      %20 = vector.shape_cast %19 : vector<1x16x1xbf16> to vector<16x1xbf16>
      %c16_20 = arith.constant 16 : index
      %c127 = arith.constant 127 : index
      %21 = vector.load %arg8[%c16_20, %c127] : memref<144x128xbf16, #tpu.memory_space<vmem>>, vector<16x1xbf16>
      tpu.vector_store %arg8[%c16_20, %c127], %20 {strides = array<i32>} : memref<144x128xbf16, #tpu.memory_space<vmem>>, vector<16x1xbf16>,
      %c0_21 = arith.constant 0 : index
      %c0_22 = arith.constant 0 : index
      %c2 = arith.constant 2 : index
      %22 = vector.load %arg3[%c0_21, %c0_22, %c2] : memref<1x16x128xbf16, #tpu.memory_space<vmem>>, vector<1x16x126xbf16>
      %23 = vector.shape_cast %22 : vector<1x16x126xbf16> to vector<16x126xbf16>
      %c32 = arith.constant 32 : index
      %c0_23 = arith.constant 0 : index
      %24 = vector.load %arg8[%c32, %c0_23] : memref<144x128xbf16, #tpu.memory_space<vmem>>, vector<16x126xbf16>
      tpu.vector_store %arg8[%c32, %c0_23], %23 {strides = array<i32>} : memref<144x128xbf16, #tpu.memory_space<vmem>>, vector<16x126xbf16>,
      %c0_24 = arith.constant 0 : index
      %c0_25 = arith.constant 0 : index
      %c0_26 = arith.constant 0 : index
      %25 = vector.load %arg4[%c0_24, %c0_25, %c0_26] : memref<1x16x128xbf16, #tpu.memory_space<vmem>>, vector<1x16x2xbf16>
      %26 = vector.shape_cast %25 : vector<1x16x2xbf16> to vector<16x2xbf16>
      %c32_27 = arith.constant 32 : index
      %c126 = arith.constant 126 : index
      %27 = vector.load %arg8[%c32_27, %c126] : memref<144x128xbf16, #tpu.memory_space<vmem>>, vector<16x2xbf16>
      tpu.vector_store %arg8[%c32_27, %c126], %26 {strides = array<i32>} : memref<144x128xbf16, #tpu.memory_space<vmem>>, vector<16x2xbf16>,
      %c0_28 = arith.constant 0 : index
      %c0_29 = arith.constant 0 : index
      %c18 = arith.constant 18 : index
      %28 = vector.load %arg3[%c0_28, %c0_29, %c18] : memref<1x16x128xbf16, #tpu.memory_space<vmem>>, vector<1x16x110xbf16>
      %29 = vector.shape_cast %28 : vector<1x16x110xbf16> to vector<16x110xbf16>
      %c48 = arith.constant 48 : index
      %c0_30 = arith.constant 0 : index
      %30 = vector.load %arg8[%c48, %c0_30] : memref<144x128xbf16, #tpu.memory_space<vmem>>, vector<16x110xbf16>
      tpu.vector_store %arg8[%c48, %c0_30], %29 {strides = array<i32>} : memref<144x128xbf16, #tpu.memory_space<vmem>>, vector<16x110xbf16>,
      %c0_31 = arith.constant 0 : index
      %c0_32 = arith.constant 0 : index
      %c0_33 = arith.constant 0 : index
      %31 = vector.load %arg4[%c0_31, %c0_32, %c0_33] : memref<1x16x128xbf16, #tpu.memory_space<vmem>>, vector<1x16x18xbf16>
      %32 = vector.shape_cast %31 : vector<1x16x18xbf16> to vector<16x18xbf16>
      %c48_34 = arith.constant 48 : index
      %c110 = arith.constant 110 : index
      %33 = vector.load %arg8[%c48_34, %c110] : memref<144x128xbf16, #tpu.memory_space<vmem>>, vector<16x18xbf16>
      tpu.vector_store %arg8[%c48_34, %c110], %32 {strides = array<i32>} : memref<144x128xbf16, #tpu.memory_space<vmem>>, vector<16x18xbf16>,
      %c0_35 = arith.constant 0 : index
      %c0_36 = arith.constant 0 : index
      %c19 = arith.constant 19 : index
      %34 = vector.load %arg3[%c0_35, %c0_36, %c19] : memref<1x16x128xbf16, #tpu.memory_space<vmem>>, vector<1x16x109xbf16>
      %35 = vector.shape_cast %34 : vector<1x16x109xbf16> to vector<16x109xbf16>
      %c64 = arith.constant 64 : index
      %c0_37 = arith.constant 0 : index
      %36 = vector.load %arg8[%c64, %c0_37] : memref<144x128xbf16, #tpu.memory_space<vmem>>, vector<16x109xbf16>
      tpu.vector_store %arg8[%c64, %c0_37], %35 {strides = array<i32>} : memref<144x128xbf16, #tpu.memory_space<vmem>>, vector<16x109xbf16>,
      %c0_38 = arith.constant 0 : index
      %c0_39 = arith.constant 0 : index
      %c0_40 = arith.constant 0 : index
      %37 = vector.load %arg4[%c0_38, %c0_39, %c0_40] : memref<1x16x128xbf16, #tpu.memory_space<vmem>>, vector<1x16x19xbf16>
      %38 = vector.shape_cast %37 : vector<1x16x19xbf16> to vector<16x19xbf16>
      %c64_41 = arith.constant 64 : index
      %c109 = arith.constant 109 : index
      %39 = vector.load %arg8[%c64_41, %c109] : memref<144x128xbf16, #tpu.memory_space<vmem>>, vector<16x19xbf16>
      tpu.vector_store %arg8[%c64_41, %c109], %38 {strides = array<i32>} : memref<144x128xbf16, #tpu.memory_space<vmem>>, vector<16x19xbf16>,
      %c0_42 = arith.constant 0 : index
      %c0_43 = arith.constant 0 : index
      %c20 = arith.constant 20 : index
      %40 = vector.load %arg3[%c0_42, %c0_43, %c20] : memref<1x16x128xbf16, #tpu.memory_space<vmem>>, vector<1x16x108xbf16>
      %41 = vector.shape_cast %40 : vector<1x16x108xbf16> to vector<16x108xbf16>
      %c80 = arith.constant 80 : index
      %c0_44 = arith.constant 0 : index
      %42 = vector.load %arg8[%c80, %c0_44] : memref<144x128xbf16, #tpu.memory_space<vmem>>, vector<16x108xbf16>
      tpu.vector_store %arg8[%c80, %c0_44], %41 {strides = array<i32>} : memref<144x128xbf16, #tpu.memory_space<vmem>>, vector<16x108xbf16>,
      %c0_45 = arith.constant 0 : index
      %c0_46 = arith.constant 0 : index
      %c0_47 = arith.constant 0 : index
      %43 = vector.load %arg4[%c0_45, %c0_46, %c0_47] : memref<1x16x128xbf16, #tpu.memory_space<vmem>>, vector<1x16x20xbf16>
      %44 = vector.shape_cast %43 : vector<1x16x20xbf16> to vector<16x20xbf16>
      %c80_48 = arith.constant 80 : index
      %c108 = arith.constant 108 : index
      %45 = vector.load %arg8[%c80_48, %c108] : memref<144x128xbf16, #tpu.memory_space<vmem>>, vector<16x20xbf16>
      tpu.vector_store %arg8[%c80_48, %c108], %44 {strides = array<i32>} : memref<144x128xbf16, #tpu.memory_space<vmem>>, vector<16x20xbf16>,
      %c0_49 = arith.constant 0 : index
      %c0_50 = arith.constant 0 : index
      %c36 = arith.constant 36 : index
      %46 = vector.load %arg3[%c0_49, %c0_50, %c36] : memref<1x16x128xbf16, #tpu.memory_space<vmem>>, vector<1x16x92xbf16>
      %47 = vector.shape_cast %46 : vector<1x16x92xbf16> to vector<16x92xbf16>
      %c96 = arith.constant 96 : index
      %c0_51 = arith.constant 0 : index
      %48 = vector.load %arg8[%c96, %c0_51] : memref<144x128xbf16, #tpu.memory_space<vmem>>, vector<16x92xbf16>
      tpu.vector_store %arg8[%c96, %c0_51], %47 {strides = array<i32>} : memref<144x128xbf16, #tpu.memory_space<vmem>>, vector<16x92xbf16>,
      %c0_52 = arith.constant 0 : index
      %c0_53 = arith.constant 0 : index
      %c0_54 = arith.constant 0 : index
      %49 = vector.load %arg4[%c0_52, %c0_53, %c0_54] : memref<1x16x128xbf16, #tpu.memory_space<vmem>>, vector<1x16x36xbf16>
      %50 = vector.shape_cast %49 : vector<1x16x36xbf16> to vector<16x36xbf16>
      %c96_55 = arith.constant 96 : index
      %c92 = arith.constant 92 : index
      %51 = vector.load %arg8[%c96_55, %c92] : memref<144x128xbf16, #tpu.memory_space<vmem>>, vector<16x36xbf16>
      tpu.vector_store %arg8[%c96_55, %c92], %50 {strides = array<i32>} : memref<144x128xbf16, #tpu.memory_space<vmem>>, vector<16x36xbf16>,
      %c0_56 = arith.constant 0 : index
      %c0_57 = arith.constant 0 : index
      %c37 = arith.constant 37 : index
      %52 = vector.load %arg3[%c0_56, %c0_57, %c37] : memref<1x16x128xbf16, #tpu.memory_space<vmem>>, vector<1x16x91xbf16>
      %53 = vector.shape_cast %52 : vector<1x16x91xbf16> to vector<16x91xbf16>
      %c112 = arith.constant 112 : index
      %c0_58 = arith.constant 0 : index
      %54 = vector.load %arg8[%c112, %c0_58] : memref<144x128xbf16, #tpu.memory_space<vmem>>, vector<16x91xbf16>
      tpu.vector_store %arg8[%c112, %c0_58], %53 {strides = array<i32>} : memref<144x128xbf16, #tpu.memory_space<vmem>>, vector<16x91xbf16>,
      %c0_59 = arith.constant 0 : index
      %c0_60 = arith.constant 0 : index
      %c0_61 = arith.constant 0 : index
      %55 = vector.load %arg4[%c0_59, %c0_60, %c0_61] : memref<1x16x128xbf16, #tpu.memory_space<vmem>>, vector<1x16x37xbf16>
      %56 = vector.shape_cast %55 : vector<1x16x37xbf16> to vector<16x37xbf16>
      %c112_62 = arith.constant 112 : index
      %c91 = arith.constant 91 : index
      %57 = vector.load %arg8[%c112_62, %c91] : memref<144x128xbf16, #tpu.memory_space<vmem>>, vector<16x37xbf16>
      tpu.vector_store %arg8[%c112_62, %c91], %56 {strides = array<i32>} : memref<144x128xbf16, #tpu.memory_space<vmem>>, vector<16x37xbf16>,
      %c0_63 = arith.constant 0 : index
      %c0_64 = arith.constant 0 : index
      %c38 = arith.constant 38 : index
      %58 = vector.load %arg3[%c0_63, %c0_64, %c38] : memref<1x16x128xbf16, #tpu.memory_space<vmem>>, vector<1x16x90xbf16>
      %59 = vector.shape_cast %58 : vector<1x16x90xbf16> to vector<16x90xbf16>
      %c128 = arith.constant 128 : index
      %c0_65 = arith.constant 0 : index
      %60 = vector.load %arg8[%c128, %c0_65] : memref<144x128xbf16, #tpu.memory_space<vmem>>, vector<16x90xbf16>
      tpu.vector_store %arg8[%c128, %c0_65], %59 {strides = array<i32>} : memref<144x128xbf16, #tpu.memory_space<vmem>>, vector<16x90xbf16>,
      %c0_66 = arith.constant 0 : index
      %c0_67 = arith.constant 0 : index
      %c0_68 = arith.constant 0 : index
      %61 = vector.load %arg4[%c0_66, %c0_67, %c0_68] : memref<1x16x128xbf16, #tpu.memory_space<vmem>>, vector<1x16x38xbf16>
      %62 = vector.shape_cast %61 : vector<1x16x38xbf16> to vector<16x38xbf16>
      %c128_69 = arith.constant 128 : index
      %c90 = arith.constant 90 : index
      %63 = vector.load %arg8[%c128_69, %c90] : memref<144x128xbf16, #tpu.memory_space<vmem>>, vector<16x38xbf16>
      tpu.vector_store %arg8[%c128_69, %c90], %62 {strides = array<i32>} : memref<144x128xbf16, #tpu.memory_space<vmem>>, vector<16x38xbf16>,
    } else {
    }
    %c0 = arith.constant 0 : index
    %c0_1 = arith.constant 0 : index
    %3 = vector.load %arg5[%c0, %c0_1] : memref<16x144xbf16, #tpu.memory_space<vmem>>, vector<16x144xbf16>
    %c0_2 = arith.constant 0 : index
    %c0_3 = arith.constant 0 : index
    %4 = vector.load %arg8[%c0_2, %c0_3] : memref<144x128xbf16, #tpu.memory_space<vmem>>, vector<144x128xbf16>
    %cst = arith.constant dense<0.000000e+00> : vector<16x128xf32>
    %5 = tpu.matmul %3, %4, %cst {dimension_numbers = #tpu.dot_dimension_numbers<[1], [0], [0], [1], [0, 0, 1, 1], [], []>} : vector<16x144xbf16>, vector<144x128xbf16>, vector<16x128xf32> -> vector<16x128xf32>
    %c0_4 = arith.constant 0 : index
    %c0_5 = arith.constant 0 : index
    %6 = vector.load %arg6[%c0_4, %c0_5] : memref<16x1xf32, #tpu.memory_space<vmem>>, vector<16x1xf32>
    %7 = vector.broadcast %6 : vector<16x1xf32> to vector<16x128xf32>
    %8 = arith.addf %5, %7 : vector<16x128xf32>
    %9 = arith.truncf %8 : vector<16x128xf32> to vector<16x128xbf16>
    %c0_6 = arith.constant 0 : index
    %c0_7 = arith.constant 0 : index
    %c0_8 = arith.constant 0 : index
    %10 = vector.load %arg7[%c0_6, %c0_7, %c0_8] : memref<1x16x128xbf16, #tpu.memory_space<vmem>>, vector<1x16x128xbf16>
    %11 = vector.shape_cast %10 : vector<1x16x128xbf16> to vector<16x128xbf16>
    %12 = vector.shape_cast %9 : vector<16x128xbf16> to vector<1x16x128xbf16>
    tpu.vector_store %arg7[%c0_6, %c0_7, %c0_8], %12 {strides = array<i32>} : memref<1x16x128xbf16, #tpu.memory_space<vmem>>, vector<1x16x128xbf16>,
    return
  }
  func.func @transform_0(%arg0: i32, %arg1: i32, %arg2: i32) -> (i32, i32, i32) {
    %c0_i32 = arith.constant 0 : i32
    %c0_i32_0 = arith.constant 0 : i32
    return %arg0, %c0_i32, %arg1 : i32, i32, i32
  }
  func.func @transform_1(%arg0: i32, %arg1: i32, %arg2: i32) -> (i32, i32, i32) {
    %c1_i32 = arith.constant 1 : i32
    %0 = arith.addi %arg1, %c1_i32 : i32
    %c0_i32 = arith.constant 0 : i32
    %c0_i32_0 = arith.constant 0 : i32
    return %arg0, %c0_i32, %0 : i32, i32, i32
  }
  func.func @transform_2(%arg0: i32, %arg1: i32, %arg2: i32) -> (i32, i32) {
    %c0_i32 = arith.constant 0 : i32
    %c0_i32_0 = arith.constant 0 : i32
    return %arg2, %c0_i32 : i32, i32
  }
  func.func @transform_3(%arg0: i32, %arg1: i32, %arg2: i32) -> (i32, i32) {
    %c0_i32 = arith.constant 0 : i32
    %c0_i32_0 = arith.constant 0 : i32
    return %arg2, %c0_i32 : i32, i32
  }
  func.func @transform_4(%arg0: i32, %arg1: i32, %arg2: i32) -> (i32, i32, i32) {
    %c0_i32 = arith.constant 0 : i32
    return %arg0, %arg2, %arg1 : i32, i32, i32
  }
}

</mosaic_0001>

<llo_original>
// kernel: hyperconv_forward.1
$region0: #{hyperconv_forward.1}
  #allocation0 [shape = 'u32[]', space=smem, size = 0x4, offset = 0x4, fixed_abs, tag = 'smem constant byte address 0x4 - core index']
  #allocation1 [shape = 'u32[72,128]{1,0:T(1,128)}', space=vmem, size = 0x9000, scoped, tag = 'internal scratch']
  #allocation2 [shape = 'bf16[144,128]{1,0:T(8,128)(2,1)}', space=vmem, size = 0x9000, scoped, tag = 'scratch operand']
  %s0 = inlined_call_operand.vmem [shape: bf16[2,16,522], index: 0, kind: input, shape index: {}, may-alias: {0,1}]
  %s1 = inlined_call_operand.vmem [shape: bf16[2,16,522], index: 1, kind: input, shape index: {}, may-alias: {0,1}]
  %s2 = inlined_call_operand.vmem [shape: bf16[16,144], index: 2, kind: input, shape index: {}]
  %s3 = inlined_call_operand.vmem [shape: f32[16,1], index: 3, kind: input, shape index: {}]
  %s4 = inlined_call_operand.vmem [shape: bf16[2,16,384], index: 4, kind: output, shape index: {}]
  %s5 = sld [smem:[#allocation0]]
  $region172: #{hyperconv_forward.1} parent=0
    _
  %s7 = ssub.s32 1, %s5
  %s8 = scalar_select 0, %s7, %s5
  $region1: #{hyperconv_forward.1} parent=0
    #allocation3 [shape = 'u8[8192]{0}', space=vmem, size = 0x2000, scoped, tag = 'input window, operand 0']
    #allocation4 [shape = 'u8[8192]{0}', space=vmem, size = 0x2000, scoped, tag = 'input window, operand 1']
    #allocation5 [shape = 'u8[8192]{0}', space=vmem, size = 0x2000, scoped, tag = 'output window, operand 0']
    loop: start=0, step=1, limit=8
    $region2: #{hyperconv_forward.1} parent=1 // loop_pre_header
      _
    $region3: #{hyperconv_forward.1} parent=1 // loop_header
      %s10 = sphi 0, %s14
      %p11 = scmp.ge.s32.totalorder %s10, 8
      %s17 = sphi 0, %s36
      %s18 = sphi 0, %s32
      %s19 = sphi 0, %s28
      %s20 = sphi 0, %s17
      %s21 = sphi 0, %s18
      %s22 = sphi 0, %s19
      %s23 = sphi 0, %s20
      %s24 = sphi 0, %s21
      %s25 = sphi 0, %s22
      %s41 = sphi 0, %s43
      %s44 = sphi 0, %s41
      %s45 = sphi 0, %s44
      %s61 = sphi 0, %s45
      %s71 = sphi 0, %s73
      %s74 = sphi 0, %s71
      %s75 = sphi 0, %s74
      %s91 = sphi 0, %s75
      %s97 = sphi 0, %s99
      %s100 = sphi 0, %s97
      %s101 = sphi 0, %s100
      %s117 = sphi 0, %s101
      %s123 = sphi 0, %s125
      %s126 = sphi 0, %s123
      %s127 = sphi 0, %s126
      %s143 = sphi 0, %s127
      %s153 = sphi 0, %s155
      %s156 = sphi 0, %s153
      %s157 = sphi 0, %s156
      %s173 = sphi 0, %s157
    $region4: #{hyperconv_forward.1} parent=1 // loop_header_branch
      %13 = sbr.rel (%p11) target = $region8
    $region5: #{hyperconv_forward.1} parent=1 // loop_body
      %s15 = ssub.s32 %s10, 1
      %s16 = ssub.s32 %s10, 2
      %s26 = sadd.s32 1, %s19
      %p27 = scmp.ge.s32.totalorder %s26, 1
      %s28 = scalar_select %p27, 0, %s26
      %s29 = sadd.s32 1, %s18
      %s30 = scalar_select %p27, %s29, %s18
      %p31 = scmp.ge.s32.totalorder %s30, 3
      %s32 = scalar_select %p31, 0, %s30
      %s33 = sadd.s32 1, %s17
      %s34 = scalar_select %p31, %s33, %s17
      %p35 = scmp.ge.s32.totalorder %s34, 2
      %s36 = scalar_select %p35, 0, %s34
      %s37 = ssub.s32 %s17, %s36
      %s38 = ssub.s32 %s18, %s32
      %s39 = sor.u32 %s37, %s38
      %p40 = scmp.eq.s32.totalorder %s39, 0
      %s42 = sadd.s32 %s41, 1
      %s43 = scalar_select %p40, %s41, %s42
      %p46 = pneg %p40
      %p47 = scmp.eq.s32.totalorder %s10, 5
      %p48 = por %p46, %p47
      %p49 = scmp.ne.s32.totalorder %s41, %s44
      %p50 = scmp.eq.s32.totalorder %s10, 0
      %p51 = por %p49, %p50
      %p52 = scmp.ne.s32.totalorder %s41, %s44
      %p53 = scmp.eq.s32.totalorder %s15, 5
      %p54 = por %p52, %p53
      %p55 = scmp.ne.s32.totalorder %s44, %s45
      %p56 = scmp.eq.s32.totalorder %s15, 0
      %p57 = por %p55, %p56
      %p58 = scmp.ne.s32.totalorder %s44, %s45
      %p59 = scmp.eq.s32.totalorder %s16, 5
      %p60 = por %p58, %p59
      %p62 = scmp.ne.s32.totalorder %s45, %s61
      %p63 = scmp.eq.s32.totalorder %s16, 0
      %p64 = por %p62, %p63
      %s65 = sadd.s32 %s18, 1
      %s66 = sadd.s32 %s32, 1
      %s67 = ssub.s32 %s17, %s36
      %s68 = ssub.s32 %s65, %s66
      %s69 = sor.u32 %s67, %s68
      %p70 = scmp.eq.s32.totalorder %s69, 0
      %s72 = sadd.s32 %s71, 1
      %s73 = scalar_select %p70, %s71, %s72
      %p76 = pneg %p70
      %p77 = scmp.eq.s32.totalorder %s10, 5
      %p78 = por %p76, %p77
      %p79 = scmp.ne.s32.totalorder %s71, %s74
      %p80 = scmp.eq.s32.totalorder %s10, 0
      %p81 = por %p79, %p80
      %p82 = scmp.ne.s32.totalorder %s71, %s74
      %p83 = scmp.eq.s32.totalorder %s15, 5
      %p84 = por %p82, %p83
      %p85 = scmp.ne.s32.totalorder %s74, %s75
      %p86 = scmp.eq.s32.totalorder %s15, 0
      %p87 = por %p85, %p86
      %p88 = scmp.ne.s32.totalorder %s74, %s75
      %p89 = scmp.eq.s32.totalorder %s16, 5
      %p90 = por %p88, %p89
      %p92 = scmp.ne.s32.totalorder %s75, %s91
      %p93 = scmp.eq.s32.totalorder %s16, 0
      %p94 = por %p92, %p93
      %s95 = ssub.s32 %s19, %s28
      %p96 = scmp.eq.s32.totalorder %s95, 0
      %s98 = sadd.s32 %s97, 1
      %s99 = scalar_select %p96, %s97, %s98
      %p102 = pneg %p96
      %p103 = scmp.eq.s32.totalorder %s10, 5
      %p104 = por %p102, %p103
      %p105 = scmp.ne.s32.totalorder %s97, %s100
      %p106 = scmp.eq.s32.totalorder %s10, 0
      %p107 = por %p105, %p106
      %p108 = scmp.ne.s32.totalorder %s97, %s100
      %p109 = scmp.eq.s32.totalorder %s15, 5
      %p110 = por %p108, %p109
      %p111 = scmp.ne.s32.totalorder %s100, %s101
      %p112 = scmp.eq.s32.totalorder %s15, 0
      %p113 = por %p111, %p112
      %p114 = scmp.ne.s32.totalorder %s100, %s101
      %p115 = scmp.eq.s32.totalorder %s16, 5
      %p116 = por %p114, %p115
      %p118 = scmp.ne.s32.totalorder %s101, %s117
      %p119 = scmp.eq.s32.totalorder %s16, 0
      %p120 = por %p118, %p119
      %s121 = ssub.s32 %s19, %s28
      %p122 = scmp.eq.s32.totalorder %s121, 0
      %s124 = sadd.s32 %s123, 1
      %s125 = scalar_select %p122, %s123, %s124
      %p128 = pneg %p122
      %p129 = scmp.eq.s32.totalorder %s10, 5
      %p130 = por %p128, %p129
      %p131 = scmp.ne.s32.totalorder %s123, %s126
      %p132 = scmp.eq.s32.totalorder %s10, 0
      %p133 = por %p131, %p132
      %p134 = scmp.ne.s32.totalorder %s123, %s126
      %p135 = scmp.eq.s32.totalorder %s15, 5
      %p136 = por %p134, %p135
      %p137 = scmp.ne.s32.totalorder %s126, %s127
      %p138 = scmp.eq.s32.totalorder %s15, 0
      %p139 = por %p137, %p138
      %p140 = scmp.ne.s32.totalorder %s126, %s127
      %p141 = scmp.eq.s32.totalorder %s16, 5
      %p142 = por %p140, %p141
      %p144 = scmp.ne.s32.totalorder %s127, %s143
      %p145 = scmp.eq.s32.totalorder %s16, 0
      %p146 = por %p144, %p145
      %s147 = ssub.s32 %s17, %s36
      %s148 = ssub.s32 %s19, %s28
      %s149 = sor.u32 %s147, %s148
      %s150 = ssub.s32 %s18, %s32
      %s151 = sor.u32 %s149, %s150
      %p152 = scmp.eq.s32.totalorder %s151, 0
      %s154 = sadd.s32 %s153, 1
      %s155 = scalar_select %p152, %s153, %s154
      %p158 = pneg %p152
      %p159 = scmp.eq.s32.totalorder %s10, 5
      %p160 = por %p158, %p159
      %p161 = scmp.ne.s32.totalorder %s153, %s156
      %p162 = scmp.eq.s32.totalorder %s10, 0
      %p163 = por %p161, %p162
      %p164 = scmp.ne.s32.totalorder %s153, %s156
      %p165 = scmp.eq.s32.totalorder %s15, 5
      %p166 = por %p164, %p165
      %p167 = scmp.ne.s32.totalorder %s156, %s157
      %p168 = scmp.eq.s32.totalorder %s15, 0
      %p169 = por %p167, %p168
      %p170 = scmp.ne.s32.totalorder %s156, %s157
      %p171 = scmp.eq.s32.totalorder %s16, 5
      %p172 = por %p170, %p171
      %p174 = scmp.ne.s32.totalorder %s157, %s173
      %p175 = scmp.eq.s32.totalorder %s16, 0
      %p176 = por %p174, %p175
      %p177 = scmp.le.s32.totalorder 1, %s10
      %p178 = scmp.lt.s32.totalorder %s10, 7
      %p179 = pnand %p177, %p178
      %p180 = pneg %p179
      // Predicated region
      $region9: #{hyperconv_forward.1} parent=5 // pred_check
        _
      $region10: #{hyperconv_forward.1} parent=5 // pred_check_branch
        %182 = sbr.rel (%p179) target = $region12
      $region11: #{hyperconv_forward.1} parent=5 // pred_region
        %s183 = ssub.s32 %s10, 1
        // Predicated region
        $region13: #{hyperconv_forward.1} parent=11 // pred_check
          %p184 = pneg %p113
        $region14: #{hyperconv_forward.1} parent=11 // pred_check_branch
          %186 = sbr.rel (%p184) target = $region16
        $region15: #{hyperconv_forward.1} parent=11 // pred_region
          %s187 = smul.u32 2, %s22
          %p188 = scmp.lt.s32.totalorder %s187, 1
          %s189 = scalar_select %p188, %s187, 1
          %s190 = smul.addr %s189, 2
          %s191 = smul.addr %s190, 4
          %s192 = scalar_lea.vmem %s2, %s191
          %s193 = smul.u32 2, %s22
        $region16: #{hyperconv_forward.1} parent=11 // pred_fallthru
          _
        // Predicated region
        $region17: #{hyperconv_forward.1} parent=11 // pred_check
          %p194 = pneg %p139
        $region18: #{hyperconv_forward.1} parent=11 // pred_check_branch
          %196 = sbr.rel (%p194) target = $region20
        $region19: #{hyperconv_forward.1} parent=11 // pred_region
          %s197 = smul.u32 2, %s22
          %p198 = scmp.lt.s32.totalorder %s197, 1
          %s199 = scalar_select %p198, %s197, 1
          %s200 = smul.addr %s199, 8
          %s201 = scalar_lea.vmem %s3, %s200
          %s202 = smul.u32 2, %s22
        $region20: #{hyperconv_forward.1} parent=11 // pred_fallthru
          _
      $region12: #{hyperconv_forward.1} parent=5 // pred_fallthru
        _
      %p203 = scmp.lt.s32.totalorder %s10, 6
      // Predicated region
      $region21: #{hyperconv_forward.1} parent=5 // pred_check
        %p204 = pneg %p203
      $region22: #{hyperconv_forward.1} parent=5 // pred_check_branch
        %206 = sbr.rel (%p204) target = $region24
      $region23: #{hyperconv_forward.1} parent=5 // pred_region
        // Predicated region
        $region25: #{hyperconv_forward.1} parent=23 // pred_check
          %p207 = pneg %p51
        $region26: #{hyperconv_forward.1} parent=23 // pred_check_branch
          %209 = sbr.rel (%p207) target = $region28
        $region27: #{hyperconv_forward.1} parent=23 // pred_region
          %s210 = sand.u32 %s41, 1
          %s211 = sand.u32 %s41, 1
          %s212 = smul.addr %s211, 8
          %s213 = scalar_lea.vmem [#allocation3], %s212
          %s214 = smul.addr %s17, 10
          %s215 = sadd.s32 %s18, %s214
          %s216 = smul.addr %s215, 4
          %s217 = scalar_lea.vmem %s0, %s216
          // Predicated region
          $region29: #{hyperconv_forward.1} parent=27 // pred_check
            _
          $region30: #{hyperconv_forward.1} parent=27 // pred_check_branch
            %219 = sbr.rel (0) target = $region32
          $region31: #{hyperconv_forward.1} parent=27 // pred_region
            // Predicated region
            $region33: #{hyperconv_forward.1} parent=31 // pred_check
              _
            $region34: #{hyperconv_forward.1} parent=31 // pred_check_branch
              %221 = sbr.rel target = $region36
            $region35: #{hyperconv_forward.1} parent=31 // pred_region
              // Predicated region
              $region48: #{hyperconv_forward.1} parent=35 // pred_check
                _
              $region49: #{hyperconv_forward.1} parent=35 // pred_check_branch
                %239 = sbr.rel (0) target = $region51
              $region50: #{hyperconv_forward.1} parent=35 // pred_region
                loop: start=0, step=1, limit=1
                $region52: #{hyperconv_forward.1} parent=50 // loop_pre_header
                  _
                $region53: #{hyperconv_forward.1} parent=50 // loop_header
                  %s241 = sphi 0, %s245
                  %p242 = scmp.ge.s32.totalorder %s241, 1
                  %s246 = sphi %s217, %s217
                  %s247 = sphi %s213, %s213
                $region54: #{hyperconv_forward.1} parent=50 // loop_header_branch
                  %244 = sbr.rel (%p242) target = $region58
                $region55: #{hyperconv_forward.1} parent=50 // loop_body
                  _
                $region56: #{hyperconv_forward.1} parent=50 // loop_footer
                  %s245 = sadd.s32 1, %s241
                $region57: #{hyperconv_forward.1} parent=50 // loop_footer_branch
                  %240 = sbr.rel target = $region53
                $region58: #{hyperconv_forward.1} parent=50 // loop_exit
                  _
                %s249 = ssub.s32 16, 1
                loop: start=0, step=1, limit=1
                $region59: #{hyperconv_forward.1} parent=50 // loop_pre_header
                  _
                $region60: #{hyperconv_forward.1} parent=50 // loop_header
                  %s251 = sphi 0, %s255
                  %p252 = scmp.ge.s32.totalorder %s251, 1
                  %s256 = sphi %s217, %s217
                  %s257 = sphi %s213, %s213
                $region61: #{hyperconv_forward.1} parent=50 // loop_header_branch
                  %254 = sbr.rel (%p252) target = $region65
                $region62: #{hyperconv_forward.1} parent=50 // loop_body
                  %v258 = vld [vmem:[%s256] sm:%s249]
                  %259 = vst [vmem:[%s257] sm:%s249] %v258
                  %v260 = vld [vmem:[%s256 + $0x14] sm:%s249]
                  %261 = vst [vmem:[%s257 + $0x4] sm:%s249] %v260
                $region63: #{hyperconv_forward.1} parent=50 // loop_footer
                  %s255 = sadd.s32 1, %s251
                $region64: #{hyperconv_forward.1} parent=50 // loop_footer_branch
                  %250 = sbr.rel target = $region60
                $region65: #{hyperconv_forward.1} parent=50 // loop_exit
                  _
              $region51: #{hyperconv_forward.1} parent=35 // pred_fallthru
                _
            $region36: #{hyperconv_forward.1} parent=31 // pred_fallthru
              _
            // Predicated region
            $region37: #{hyperconv_forward.1} parent=31 // pred_check
              _
            $region38: #{hyperconv_forward.1} parent=31 // pred_check_branch
              %223 = sbr.rel (0) target = $region40
            $region39: #{hyperconv_forward.1} parent=31 // pred_region
              %s225 = ssub.s32 16, 1
              loop: start=0, step=1, limit=1
              $region41: #{hyperconv_forward.1} parent=39 // loop_pre_header
                _
              $region42: #{hyperconv_forward.1} parent=39 // loop_header
                %s227 = sphi 0, %s231
                %p228 = scmp.ge.s32.totalorder %s227, 1
                %s232 = sphi %s217, %s217
                %s233 = sphi %s213, %s213
              $region43: #{hyperconv_forward.1} parent=39 // loop_header_branch
                %230 = sbr.rel (%p228) target = $region47
              $region44: #{hyperconv_forward.1} parent=39 // loop_body
                %v234 = vld [vmem:[%s232] sm:%s225]
                %235 = vst [vmem:[%s233] sm:%s225] %v234
                %v236 = vld [vmem:[%s232 + $0x14] sm:%s225]
                %237 = vst [vmem:[%s233 + $0x4] sm:%s225] %v236
              $region45: #{hyperconv_forward.1} parent=39 // loop_footer
                %s231 = sadd.s32 1, %s227
              $region46: #{hyperconv_forward.1} parent=39 // loop_footer_branch
                %226 = sbr.rel target = $region42
              $region47: #{hyperconv_forward.1} parent=39 // loop_exit
                _
            $region40: #{hyperconv_forward.1} parent=31 // pred_fallthru
              _
          $region32: #{hyperconv_forward.1} parent=27 // pred_fallthru
            _
          %262 = vnop
        $region28: #{hyperconv_forward.1} parent=23 // pred_fallthru
          _
        // Predicated region
        $region66: #{hyperconv_forward.1} parent=23 // pred_check
          %p263 = pneg %p81
        $region67: #{hyperconv_forward.1} parent=23 // pred_check_branch
          %265 = sbr.rel (%p263) target = $region69
        $region68: #{hyperconv_forward.1} parent=23 // pred_region
          %s266 = sand.u32 %s71, 1
          %s267 = sand.u32 %s71, 1
          %s268 = smul.addr %s267, 8
          %s269 = scalar_lea.vmem [#allocation4], %s268
          %s270 = sadd.s32 %s18, 1
          %s271 = smul.addr %s17, 10
          %s272 = sadd.s32 %s270, %s271
          %s273 = smul.addr %s272, 4
          %s274 = scalar_lea.vmem %s1, %s273
          // Predicated region
          $region70: #{hyperconv_forward.1} parent=68 // pred_check
            _
          $region71: #{hyperconv_forward.1} parent=68 // pred_check_branch
            %276 = sbr.rel (0) target = $region73
          $region72: #{hyperconv_forward.1} parent=68 // pred_region
            // Predicated region
            $region74: #{hyperconv_forward.1} parent=72 // pred_check
              _
            $region75: #{hyperconv_forward.1} parent=72 // pred_check_branch
              %278 = sbr.rel target = $region77
            $region76: #{hyperconv_forward.1} parent=72 // pred_region
              // Predicated region
              $region89: #{hyperconv_forward.1} parent=76 // pred_check
                _
              $region90: #{hyperconv_forward.1} parent=76 // pred_check_branch
                %296 = sbr.rel (0) target = $region92
              $region91: #{hyperconv_forward.1} parent=76 // pred_region
                loop: start=0, step=1, limit=1
                $region93: #{hyperconv_forward.1} parent=91 // loop_pre_header
                  _
                $region94: #{hyperconv_forward.1} parent=91 // loop_header
                  %s298 = sphi 0, %s302
                  %p299 = scmp.ge.s32.totalorder %s298, 1
                  %s303 = sphi %s274, %s274
                  %s304 = sphi %s269, %s269
                $region95: #{hyperconv_forward.1} parent=91 // loop_header_branch
                  %301 = sbr.rel (%p299) target = $region99
                $region96: #{hyperconv_forward.1} parent=91 // loop_body
                  _
                $region97: #{hyperconv_forward.1} parent=91 // loop_footer
                  %s302 = sadd.s32 1, %s298
                $region98: #{hyperconv_forward.1} parent=91 // loop_footer_branch
                  %297 = sbr.rel target = $region94
                $region99: #{hyperconv_forward.1} parent=91 // loop_exit
                  _
                %s306 = ssub.s32 16, 1
                loop: start=0, step=1, limit=1
                $region100: #{hyperconv_forward.1} parent=91 // loop_pre_header
                  _
                $region101: #{hyperconv_forward.1} parent=91 // loop_header
                  %s308 = sphi 0, %s312
                  %p309 = scmp.ge.s32.totalorder %s308, 1
                  %s313 = sphi %s274, %s274
                  %s314 = sphi %s269, %s269
                $region102: #{hyperconv_forward.1} parent=91 // loop_header_branch
                  %311 = sbr.rel (%p309) target = $region106
                $region103: #{hyperconv_forward.1} parent=91 // loop_body
                  %v315 = vld [vmem:[%s313] sm:%s306]
                  %316 = vst [vmem:[%s314] sm:%s306] %v315
                  %v317 = vld [vmem:[%s313 + $0x14] sm:%s306]
                  %318 = vst [vmem:[%s314 + $0x4] sm:%s306] %v317
                $region104: #{hyperconv_forward.1} parent=91 // loop_footer
                  %s312 = sadd.s32 1, %s308
                $region105: #{hyperconv_forward.1} parent=91 // loop_footer_branch
                  %307 = sbr.rel target = $region101
                $region106: #{hyperconv_forward.1} parent=91 // loop_exit
                  _
              $region92: #{hyperconv_forward.1} parent=76 // pred_fallthru
                _
            $region77: #{hyperconv_forward.1} parent=72 // pred_fallthru
              _
            // Predicated region
            $region78: #{hyperconv_forward.1} parent=72 // pred_check
              _
            $region79: #{hyperconv_forward.1} parent=72 // pred_check_branch
              %280 = sbr.rel (0) target = $region81
            $region80: #{hyperconv_forward.1} parent=72 // pred_region
              %s282 = ssub.s32 16, 1
              loop: start=0, step=1, limit=1
              $region82: #{hyperconv_forward.1} parent=80 // loop_pre_header
                _
              $region83: #{hyperconv_forward.1} parent=80 // loop_header
                %s284 = sphi 0, %s288
                %p285 = scmp.ge.s32.totalorder %s284, 1
                %s289 = sphi %s274, %s274
                %s290 = sphi %s269, %s269
              $region84: #{hyperconv_forward.1} parent=80 // loop_header_branch
                %287 = sbr.rel (%p285) target = $region88
              $region85: #{hyperconv_forward.1} parent=80 // loop_body
                %v291 = vld [vmem:[%s289] sm:%s282]
                %292 = vst [vmem:[%s290] sm:%s282] %v291
                %v293 = vld [vmem:[%s289 + $0x14] sm:%s282]
                %294 = vst [vmem:[%s290 + $0x4] sm:%s282] %v293
              $region86: #{hyperconv_forward.1} parent=80 // loop_footer
                %s288 = sadd.s32 1, %s284
              $region87: #{hyperconv_forward.1} parent=80 // loop_footer_branch
                %283 = sbr.rel target = $region83
              $region88: #{hyperconv_forward.1} parent=80 // loop_exit
                _
            $region81: #{hyperconv_forward.1} parent=72 // pred_fallthru
              _
          $region73: #{hyperconv_forward.1} parent=68 // pred_fallthru
            _
          %319 = vnop
        $region69: #{hyperconv_forward.1} parent=23 // pred_fallthru
          _
      $region24: #{hyperconv_forward.1} parent=5 // pred_fallthru
        _
      %p320 = scmp.le.s32.totalorder 1, %s10
      %p321 = scmp.lt.s32.totalorder %s10, 7
      %p322 = pnand %p320, %p321
      %p323 = pneg %p322
      // Predicated region
      $region107: #{hyperconv_forward.1} parent=5 // pred_check
        _
      $region108: #{hyperconv_forward.1} parent=5 // pred_check_branch
        %325 = sbr.rel (%p322) target = $region110
      $region109: #{hyperconv_forward.1} parent=5 // pred_region
        %s326 = ssub.s32 %s10, 1
        %s327 = sand.u32 %s44, 1
        %s328 = sand.u32 %s44, 1
        %s329 = smul.addr %s328, 8
        %s330 = scalar_lea.vmem [#allocation3], %s329
        // Predicated region
        $region111: #{hyperconv_forward.1} parent=109 // pred_check
          %p331 = pneg %p57
        $region112: #{hyperconv_forward.1} parent=109 // pred_check_branch
          %333 = sbr.rel (%p331) target = $region114
        $region113: #{hyperconv_forward.1} parent=109 // pred_region
          _
        $region114: #{hyperconv_forward.1} parent=109 // pred_fallthru
          _
        %s334 = sand.u32 %s74, 1
        %s335 = sand.u32 %s74, 1
        %s336 = smul.addr %s335, 8
        %s337 = scalar_lea.vmem [#allocation4], %s336
        // Predicated region
        $region115: #{hyperconv_forward.1} parent=109 // pred_check
          %p338 = pneg %p87
        $region116: #{hyperconv_forward.1} parent=109 // pred_check_branch
          %340 = sbr.rel (%p338) target = $region118
        $region117: #{hyperconv_forward.1} parent=109 // pred_region
          _
        $region118: #{hyperconv_forward.1} parent=109 // pred_fallthru
          _
        %s341 = sand.u32 %s44, 1
        %s342 = sand.u32 %s44, 1
        %s343 = smul.addr %s342, 8
        %s344 = scalar_lea.vmem [#allocation3], %s343
        %p345 = pneg %p57
        %p346 = pneg %p54
        %s347 = sand.u32 %s74, 1
        %s348 = sand.u32 %s74, 1
        %s349 = smul.addr %s348, 8
        %s350 = scalar_lea.vmem [#allocation4], %s349
        %p351 = pneg %p87
        %p352 = pneg %p84
        %s353 = smul.u32 2, %s22
        %p354 = scmp.lt.s32.totalorder %s353, 1
        %s355 = scalar_select %p354, %s353, 1
        %s356 = smul.addr %s355, 2
        %s357 = smul.addr %s356, 4
        %s358 = scalar_lea.vmem %s2, %s357
        %p359 = pneg %p113
        %p360 = pneg %p110
        %s361 = smul.u32 2, %s22
        %p362 = scmp.lt.s32.totalorder %s361, 1
        %s363 = scalar_select %p362, %s361, 1
        %s364 = smul.addr %s363, 8
        %s365 = scalar_lea.vmem %s3, %s364
        %p366 = pneg %p139
        %p367 = pneg %p136
        %p368 = pneg %p169
        %p369 = pneg %p166
        %s370 = sand.u32 %s156, 1
        %s371 = sand.u32 %s156, 1
        %s372 = smul.addr %s371, 8
        %s373 = scalar_lea.vmem [#allocation5], %s372
        %s374 = sadd.s32 %s21, 1
        %s375 = smul.u32 2, %s22
        %p376 = scmp.lt.s32.totalorder %s375, 1
        %s377 = scalar_select %p376, %s375, 1
        %s378 = smul.addr %s377, 2
        %s379 = smul.addr %s378, 4
        %s380 = scalar_lea.vmem %s2, %s379
        %s381 = smul.u32 2, %s22
        %s382 = smul.u32 2, %s22
        %p383 = scmp.lt.s32.totalorder %s382, 1
        %s384 = scalar_select %p383, %s382, 1
        %s385 = smul.addr %s384, 8
        %s386 = scalar_lea.vmem %s3, %s385
        %s387 = smul.u32 2, %s22
        %s388 = smul.u32 2, %s22
        %p390 = scmp.eq.s32.totalorder %s22, 0
        // Predicated region
        $region119: #{hyperconv_forward.1} parent=109 // pred_check
          %p391 = pneg %p390
        $region120: #{hyperconv_forward.1} parent=109 // pred_check_branch
          %393 = sbr.rel (%p391) target = $region122
        $region121: #{hyperconv_forward.1} parent=109 // pred_region
          %v394 = vld [vmem:[%s330] sm:$0xf]
          %v395 = vld [vmem:[%s330 + $0x4] sm:$0xf]
          %396 = vst [vmem:[#allocation2] sm:$0xf] %v394
          %397 = vst [vmem:[#allocation2 + $0x4] sm:$0xf] %v395
          %v398 = vld [vmem:[%s330] sm:$0xf]
          %v399 = vld [vmem:[%s330 + $0x4] sm:$0xf]
          %402 = vrot.lane.b32.xlu0 %v398, 127
          %v403 = vpop.permute.xlu0 %402
          %404 = vrot.lane.b32.xlu0 %v399, 127
          %v405 = vpop.permute.xlu0 %404
          %vm408 = vcmask 1035264
          %409 = vst.msk [vmem:[#allocation2 + $0x8] sm:$0xf] %vm408, %v403
          %410 = vst.msk [vmem:[#allocation2 + $0xc] sm:$0xf] %vm408, %v405
          %v411 = vld [vmem:[%s337] sm:$0xf]
          %v412 = vld [vmem:[%s337 + $0x4] sm:$0xf]
          %415 = vrot.lane.b32.xlu0 %v411, 127
          %v416 = vpop.permute.xlu0 %415
          %417 = vrot.lane.b32.xlu0 %v412, 127
          %v418 = vpop.permute.xlu0 %417
          %vm421 = vcmask 1044472
          %422 = vst.msk [vmem:[#allocation2 + $0x8] sm:$0xf] %vm421, %v416
          %423 = vst.msk [vmem:[#allocation2 + $0xc] sm:$0xf] %vm421, %v418
          %v424 = vld [vmem:[%s330] sm:$0xf]
          %v425 = vld [vmem:[%s330 + $0x4] sm:$0xf]
          %428 = vrot.lane.b32.xlu0 %v424, 126
          %v429 = vpop.permute.xlu0 %428
          %430 = vrot.lane.b32.xlu0 %v425, 126
          %v431 = vpop.permute.xlu0 %430
          %vm434 = vcmask 1027072
          %435 = vst.msk [vmem:[#allocation2 + $0x10] sm:$0xf] %vm434, %v429
          %436 = vst.msk [vmem:[#allocation2 + $0x14] sm:$0xf] %vm434, %v431
          %v437 = vld [vmem:[%s337] sm:$0xf]
          %v438 = vld [vmem:[%s337 + $0x4] sm:$0xf]
          %441 = vrot.lane.b32.xlu0 %v437, 126
          %v442 = vpop.permute.xlu0 %441
          %443 = vrot.lane.b32.xlu0 %v438, 126
          %v444 = vpop.permute.xlu0 %443
          %vm447 = vcmask 1044464
          %448 = vst.msk [vmem:[#allocation2 + $0x10] sm:$0xf] %vm447, %v442
          %449 = vst.msk [vmem:[#allocation2 + $0x14] sm:$0xf] %vm447, %v444
          %v450 = vld [vmem:[%s330] sm:$0xf]
          %v451 = vld [vmem:[%s330 + $0x4] sm:$0xf]
          %454 = vrot.lane.b32.xlu0 %v450, 110
          %v455 = vpop.permute.xlu0 %454
          %456 = vrot.lane.b32.xlu0 %v451, 110
          %v457 = vpop.permute.xlu0 %456
          %vm460 = vcmask 896000
          %461 = vst.msk [vmem:[#allocation2 + $0x18] sm:$0xf] %vm460, %v455
          %462 = vst.msk [vmem:[#allocation2 + $0x1c] sm:$0xf] %vm460, %v457
          %v463 = vld [vmem:[%s337] sm:$0xf]
          %v464 = vld [vmem:[%s337 + $0x4] sm:$0xf]
          %467 = vrot.lane.b32.xlu0 %v463, 110
          %v468 = vpop.permute.xlu0 %467
          %469 = vrot.lane.b32.xlu0 %v464, 110
          %v470 = vpop.permute.xlu0 %469
          %vm473 = vcmask 1044336
          %474 = vst.msk [vmem:[#allocation2 + $0x18] sm:$0xf] %vm473, %v468
          %475 = vst.msk [vmem:[#allocation2 + $0x1c] sm:$0xf] %vm473, %v470
          %v476 = vld [vmem:[%s330] sm:$0xf]
          %v477 = vld [vmem:[%s330 + $0x4] sm:$0xf]
          %480 = vrot.lane.b32.xlu0 %v476, 109
          %v481 = vpop.permute.xlu0 %480
          %482 = vrot.lane.b32.xlu0 %v477, 109
          %v483 = vpop.permute.xlu0 %482
          %vm486 = vcmask 887808
          %487 = vst.msk [vmem:[#allocation2 + $0x20] sm:$0xf] %vm486, %v481
          %488 = vst.msk [vmem:[#allocation2 + $0x24] sm:$0xf] %vm486, %v483
          %v489 = vld [vmem:[%s337] sm:$0xf]
          %v490 = vld [vmem:[%s337 + $0x4] sm:$0xf]
          %493 = vrot.lane.b32.xlu0 %v489, 109
          %v494 = vpop.permute.xlu0 %493
          %495 = vrot.lane.b32.xlu0 %v490, 109
          %v496 = vpop.permute.xlu0 %495
          %vm499 = vcmask 1044328
          %500 = vst.msk [vmem:[#allocation2 + $0x20] sm:$0xf] %vm499, %v494
          %501 = vst.msk [vmem:[#allocation2 + $0x24] sm:$0xf] %vm499, %v496
          %v502 = vld [vmem:[%s330] sm:$0xf]
          %v503 = vld [vmem:[%s330 + $0x4] sm:$0xf]
          %506 = vrot.lane.b32.xlu0 %v502, 108
          %v507 = vpop.permute.xlu0 %506
          %508 = vrot.lane.b32.xlu0 %v503, 108
          %v509 = vpop.permute.xlu0 %508
          %vm512 = vcmask 879616
          %513 = vst.msk [vmem:[#allocation2 + $0x28] sm:$0xf] %vm512, %v507
          %514 = vst.msk [vmem:[#allocation2 + $0x2c] sm:$0xf] %vm512, %v509
          %v515 = vld [vmem:[%s337] sm:$0xf]
          %v516 = vld [vmem:[%s337 + $0x4] sm:$0xf]
          %519 = vrot.lane.b32.xlu0 %v515, 108
          %v520 = vpop.permute.xlu0 %519
          %521 = vrot.lane.b32.xlu0 %v516, 108
          %v522 = vpop.permute.xlu0 %521
          %vm525 = vcmask 1044320
          %526 = vst.msk [vmem:[#allocation2 + $0x28] sm:$0xf] %vm525, %v520
          %527 = vst.msk [vmem:[#allocation2 + $0x2c] sm:$0xf] %vm525, %v522
          %v528 = vld [vmem:[%s330] sm:$0xf]
          %v529 = vld [vmem:[%s330 + $0x4] sm:$0xf]
          %532 = vrot.lane.b32.xlu0 %v528, 92
          %v533 = vpop.permute.xlu0 %532
          %534 = vrot.lane.b32.xlu0 %v529, 92
          %v535 = vpop.permute.xlu0 %534
          %vm538 = vcmask 748544
          %539 = vst.msk [vmem:[#allocation2 + $0x30] sm:$0xf] %vm538, %v533
          %540 = vst.msk [vmem:[#allocation2 + $0x34] sm:$0xf] %vm538, %v535
          %v541 = vld [vmem:[%s337] sm:$0xf]
          %v542 = vld [vmem:[%s337 + $0x4] sm:$0xf]
          %545 = vrot.lane.b32.xlu0 %v541, 92
          %v546 = vpop.permute.xlu0 %545
          %547 = vrot.lane.b32.xlu0 %v542, 92
          %v548 = vpop.permute.xlu0 %547
          %vm551 = vcmask 1044192
          %552 = vst.msk [vmem:[#allocation2 + $0x30] sm:$0xf] %vm551, %v546
          %553 = vst.msk [vmem:[#allocation2 + $0x34] sm:$0xf] %vm551, %v548
          %v554 = vld [vmem:[%s330] sm:$0xf]
          %v555 = vld [vmem:[%s330 + $0x4] sm:$0xf]
          %558 = vrot.lane.b32.xlu0 %v554, 91
          %v559 = vpop.permute.xlu0 %558
          %560 = vrot.lane.b32.xlu0 %v555, 91
          %v561 = vpop.permute.xlu0 %560
          %vm564 = vcmask 740352
          %565 = vst.msk [vmem:[#allocation2 + $0x38] sm:$0xf] %vm564, %v559
          %566 = vst.msk [vmem:[#allocation2 + $0x3c] sm:$0xf] %vm564, %v561
          %v567 = vld [vmem:[%s337] sm:$0xf]
          %v568 = vld [vmem:[%s337 + $0x4] sm:$0xf]
          %571 = vrot.lane.b32.xlu0 %v567, 91
          %v572 = vpop.permute.xlu0 %571
          %573 = vrot.lane.b32.xlu0 %v568, 91
          %v574 = vpop.permute.xlu0 %573
          %vm577 = vcmask 1044184
          %578 = vst.msk [vmem:[#allocation2 + $0x38] sm:$0xf] %vm577, %v572
          %579 = vst.msk [vmem:[#allocation2 + $0x3c] sm:$0xf] %vm577, %v574
          %v580 = vld [vmem:[%s330] sm:$0xf]
          %v581 = vld [vmem:[%s330 + $0x4] sm:$0xf]
          %584 = vrot.lane.b32.xlu0 %v580, 90
          %v585 = vpop.permute.xlu0 %584
          %586 = vrot.lane.b32.xlu0 %v581, 90
          %v587 = vpop.permute.xlu0 %586
          %vm590 = vcmask 732160
          %591 = vst.msk [vmem:[#allocation2 + $0x40] sm:$0xf] %vm590, %v585
          %592 = vst.msk [vmem:[#allocation2 + $0x44] sm:$0xf] %vm590, %v587
          %v593 = vld [vmem:[%s337] sm:$0xf]
          %v594 = vld [vmem:[%s337 + $0x4] sm:$0xf]
          %597 = vrot.lane.b32.xlu0 %v593, 90
          %v598 = vpop.permute.xlu0 %597
          %599 = vrot.lane.b32.xlu0 %v594, 90
          %v600 = vpop.permute.xlu0 %599
          %vm603 = vcmask 1044176
          %604 = vst.msk [vmem:[#allocation2 + $0x40] sm:$0xf] %vm603, %v598
          %605 = vst.msk [vmem:[#allocation2 + $0x44] sm:$0xf] %vm603, %v600
        $region122: #{hyperconv_forward.1} parent=109 // pred_fallthru
          _
        %v606 = vld [vmem:[%s380] sm:$0xff]
        %v607 = vld [vmem:[%s380 + $0x8] sm:$0xff]
        %v608 = vld [vmem:[#allocation2] sm:$0xf]
        %v609 = vld [vmem:[#allocation2 + $0x4] sm:$0xf]
        %v610 = vld [vmem:[#allocation2 + $0x8] sm:$0xf]
        %v611 = vld [vmem:[#allocation2 + $0xc] sm:$0xf]
        %v612 = vld [vmem:[#allocation2 + $0x10] sm:$0xf]
        %v613 = vld [vmem:[#allocation2 + $0x14] sm:$0xf]
        %v614 = vld [vmem:[#allocation2 + $0x18] sm:$0xf]
        %v615 = vld [vmem:[#allocation2 + $0x1c] sm:$0xf]
        %v616 = vld [vmem:[#allocation2 + $0x20] sm:$0xf]
        %v617 = vld [vmem:[#allocation2 + $0x24] sm:$0xf]
        %v618 = vld [vmem:[#allocation2 + $0x28] sm:$0xf]
        %v619 = vld [vmem:[#allocation2 + $0x2c] sm:$0xf]
        %v620 = vld [vmem:[#allocation2 + $0x30] sm:$0xf]
        %v621 = vld [vmem:[#allocation2 + $0x34] sm:$0xf]
        %v622 = vld [vmem:[#allocation2 + $0x38] sm:$0xf]
        %v623 = vld [vmem:[#allocation2 + $0x3c] sm:$0xf]
        %v624 = vld [vmem:[#allocation2 + $0x40] sm:$0xf]
        %v625 = vld [vmem:[#allocation2 + $0x44] sm:$0xf]
        %v626 = vld [vmem:[%s386] sm:$0xff]
        %v627 = vld [vmem:[%s386 + $0x8] sm:$0xff]
        %629 = vset.pattern.permute.xlu0 0
        %630 = vperm.xlu0 %629, %v626
        %v631 = vpop.permute.xlu0 %630
        %634 = vset.pattern.permute.xlu0 0
        %635 = vperm.xlu0 %634, %v627
        %v636 = vpop.permute.xlu0 %635
        %v640 = vunpack.c.l.b16 %v606
        %v641 = vunpack.c.h.b16 %v606
        %v642 = vunpack.c.l.b16 %v607
        %v643 = vunpack.c.h.b16 %v607
        %v644 = vpack.c.b16 %v642, %v640
        %v645 = vpack.c.b16 %v643, %v641
        %v665 = vunpack.c.l.b16 %v608
        %v666 = vunpack.c.l.b16 %v609
        %v667 = vunpack.c.l.b16 %v610
        %v668 = vunpack.c.l.b16 %v611
        %v669 = vunpack.c.l.b16 %v612
        %v670 = vunpack.c.l.b16 %v613
        %v671 = vunpack.c.l.b16 %v614
        %v672 = vunpack.c.l.b16 %v615
        %v673 = vunpack.c.l.b16 %v616
        %v674 = vunpack.c.l.b16 %v617
        %v675 = vunpack.c.l.b16 %v618
        %v676 = vunpack.c.l.b16 %v619
        %v677 = vunpack.c.l.b16 %v620
        %v678 = vunpack.c.l.b16 %v621
        %v679 = vunpack.c.l.b16 %v622
        %v680 = vunpack.c.l.b16 %v623
        %v681 = vunpack.c.l.b16 %v624
        %v682 = vunpack.c.l.b16 %v625
        %v683 = vpack.c.b16 %v666, %v665
        %v684 = vpack.c.b16 %v668, %v667
        %v685 = vpack.c.b16 %v670, %v669
        %v686 = vpack.c.b16 %v672, %v671
        %v687 = vpack.c.b16 %v674, %v673
        %v688 = vpack.c.b16 %v676, %v675
        %v689 = vpack.c.b16 %v678, %v677
        %v690 = vpack.c.b16 %v680, %v679
        %v691 = vpack.c.b16 %v682, %v681
        %vm701 = vcmask 130048
        %v703 = vsel %vm701, %v645, 0
        %705 = vmatpush.bf16.msra.mxu0 %v690
        %706 = vmatpush.bf16.msra.mxu0 %v689
        %707 = vmatpush.bf16.msra.mxu0 %v688
        %708 = vmatpush.bf16.msra.mxu0 %v687
        %709 = vmatpush.bf16.msra.mxu0 %v686
        %710 = vmatpush.bf16.msra.mxu0 %v685
        %711 = vmatpush.bf16.msra.mxu0 %v684
        %712 = vmatpush.bf16.msra.mxu0 %v683
        %713 = vmatmul.bf16.gmra.mxu0 %v644
        %v714 = vpop.f32.mrf.mxu0
        %v715 = vadd.f32 %v631, %v714
        %v716 = vpop.f32.mrf.mxu0
        %v717 = vadd.f32 %v636, %v716
        %718 = vdwg.mxu0
        %719 = vmatpush.bf16.msra.mxu0 0
        %720 = vmatpush.bf16.msra.mxu0 0
        %721 = vmatpush.bf16.msra.mxu0 0
        %722 = vmatpush.bf16.msra.mxu0 0
        %723 = vmatpush.bf16.msra.mxu0 0
        %724 = vmatpush.bf16.msra.mxu0 0
        %725 = vmatpush.bf16.msra.mxu0 0
        %726 = vmatpush.bf16.msra.mxu0 %v691
        %727 = vmatmul.bf16.gmra.mxu0 %v703
        %v728 = vpop.f32.mrf.mxu0
        %v729 = vadd.f32 %v715, %v728
        %v730 = vpop.f32.mrf.mxu0
        %v731 = vadd.f32 %v717, %v730
        %732 = vdwg.mxu0
        %v733 = vpack.c.bf16 %v729, %v729
        %v734 = vpack.c.bf16 %v731, %v731
        %735 = vst [vmem:[%s373] sm:$0xf] %v733
        %736 = vst [vmem:[%s373 + $0x4] sm:$0xf] %v734
        %s737 = sand.u32 %s156, 1
        %s738 = sand.u32 %s156, 1
        %s739 = smul.addr %s738, 8
        %s740 = scalar_lea.vmem [#allocation5], %s739
        // Predicated region
        $region123: #{hyperconv_forward.1} parent=109 // pred_check
          %p741 = pneg %p166
        $region124: #{hyperconv_forward.1} parent=109 // pred_check_branch
          %743 = sbr.rel (%p741) target = $region126
        $region125: #{hyperconv_forward.1} parent=109 // pred_region
          %s744 = smul.u32 2, %s22
          %s745 = smul.addr %s744, 3
          %s746 = sadd.s32 %s21, %s745
          %s747 = smul.addr %s20, 6
          %s748 = sadd.s32 %s746, %s747
          %s749 = smul.addr %s748, 4
          %s750 = scalar_lea.vmem %s4, %s749
          // Predicated region
          $region127: #{hyperconv_forward.1} parent=125 // pred_check
            _
          $region128: #{hyperconv_forward.1} parent=125 // pred_check_branch
            %752 = sbr.rel (0) target = $region130
          $region129: #{hyperconv_forward.1} parent=125 // pred_region
            // Predicated region
            $region131: #{hyperconv_forward.1} parent=129 // pred_check
              _
            $region132: #{hyperconv_forward.1} parent=129 // pred_check_branch
              %754 = sbr.rel target = $region134
            $region133: #{hyperconv_forward.1} parent=129 // pred_region
              // Predicated region
              $region146: #{hyperconv_forward.1} parent=133 // pred_check
                _
              $region147: #{hyperconv_forward.1} parent=133 // pred_check_branch
                %772 = sbr.rel (0) target = $region149
              $region148: #{hyperconv_forward.1} parent=133 // pred_region
                loop: start=0, step=1, limit=1
                $region150: #{hyperconv_forward.1} parent=148 // loop_pre_header
                  _
                $region151: #{hyperconv_forward.1} parent=148 // loop_header
                  %s774 = sphi 0, %s778
                  %p775 = scmp.ge.s32.totalorder %s774, 1
                  %s779 = sphi %s740, %s740
                  %s780 = sphi %s750, %s750
                $region152: #{hyperconv_forward.1} parent=148 // loop_header_branch
                  %777 = sbr.rel (%p775) target = $region156
                $region153: #{hyperconv_forward.1} parent=148 // loop_body
                  _
                $region154: #{hyperconv_forward.1} parent=148 // loop_footer
                  %s778 = sadd.s32 1, %s774
                $region155: #{hyperconv_forward.1} parent=148 // loop_footer_branch
                  %773 = sbr.rel target = $region151
                $region156: #{hyperconv_forward.1} parent=148 // loop_exit
                  _
                %s782 = ssub.s32 16, 1
                loop: start=0, step=1, limit=1
                $region157: #{hyperconv_forward.1} parent=148 // loop_pre_header
                  _
                $region158: #{hyperconv_forward.1} parent=148 // loop_header
                  %s784 = sphi 0, %s788
                  %p785 = scmp.ge.s32.totalorder %s784, 1
                  %s789 = sphi %s740, %s740
                  %s790 = sphi %s750, %s750
                $region159: #{hyperconv_forward.1} parent=148 // loop_header_branch
                  %787 = sbr.rel (%p785) target = $region163
                $region160: #{hyperconv_forward.1} parent=148 // loop_body
                  %v791 = vld [vmem:[%s789] sm:%s782]
                  %792 = vst [vmem:[%s790] sm:%s782] %v791
                  %v793 = vld [vmem:[%s789 + $0x4] sm:%s782]
                  %794 = vst [vmem:[%s790 + $0xc] sm:%s782] %v793
                $region161: #{hyperconv_forward.1} parent=148 // loop_footer
                  %s788 = sadd.s32 1, %s784
                $region162: #{hyperconv_forward.1} parent=148 // loop_footer_branch
                  %783 = sbr.rel target = $region158
                $region163: #{hyperconv_forward.1} parent=148 // loop_exit
                  _
              $region149: #{hyperconv_forward.1} parent=133 // pred_fallthru
                _
            $region134: #{hyperconv_forward.1} parent=129 // pred_fallthru
              _
            // Predicated region
            $region135: #{hyperconv_forward.1} parent=129 // pred_check
              _
            $region136: #{hyperconv_forward.1} parent=129 // pred_check_branch
              %756 = sbr.rel (0) target = $region138
            $region137: #{hyperconv_forward.1} parent=129 // pred_region
              %s758 = ssub.s32 16, 1
              loop: start=0, step=1, limit=1
              $region139: #{hyperconv_forward.1} parent=137 // loop_pre_header
                _
              $region140: #{hyperconv_forward.1} parent=137 // loop_header
                %s760 = sphi 0, %s764
                %p761 = scmp.ge.s32.totalorder %s760, 1
                %s765 = sphi %s740, %s740
                %s766 = sphi %s750, %s750
              $region141: #{hyperconv_forward.1} parent=137 // loop_header_branch
                %763 = sbr.rel (%p761) target = $region145
              $region142: #{hyperconv_forward.1} parent=137 // loop_body
                %v767 = vld [vmem:[%s765] sm:%s758]
                %768 = vst [vmem:[%s766] sm:%s758] %v767
                %v769 = vld [vmem:[%s765 + $0x4] sm:%s758]
                %770 = vst [vmem:[%s766 + $0xc] sm:%s758] %v769
              $region143: #{hyperconv_forward.1} parent=137 // loop_footer
                %s764 = sadd.s32 1, %s760
              $region144: #{hyperconv_forward.1} parent=137 // loop_footer_branch
                %759 = sbr.rel target = $region140
              $region145: #{hyperconv_forward.1} parent=137 // loop_exit
                _
            $region138: #{hyperconv_forward.1} parent=129 // pred_fallthru
              _
          $region130: #{hyperconv_forward.1} parent=125 // pred_fallthru
            _
          %795 = vnop
        $region126: #{hyperconv_forward.1} parent=109 // pred_fallthru
          _
      $region110: #{hyperconv_forward.1} parent=5 // pred_fallthru
        _
      %p796 = scmp.le.s32.totalorder 2, %s10
      // Predicated region
      $region164: #{hyperconv_forward.1} parent=5 // pred_check
        %p797 = pneg %p796
      $region165: #{hyperconv_forward.1} parent=5 // pred_check_branch
        %799 = sbr.rel (%p797) target = $region167
      $region166: #{hyperconv_forward.1} parent=5 // pred_region
        %s800 = ssub.s32 %s10, 2
        // Predicated region
        $region168: #{hyperconv_forward.1} parent=166 // pred_check
          %p801 = pneg %p172
        $region169: #{hyperconv_forward.1} parent=166 // pred_check_branch
          %803 = sbr.rel (%p801) target = $region171
        $region170: #{hyperconv_forward.1} parent=166 // pred_region
          %s804 = sand.u32 %s157, 1
          %s805 = sand.u32 %s157, 1
          %s806 = smul.addr %s805, 8
          %s807 = scalar_lea.vmem [#allocation5], %s806
        $region171: #{hyperconv_forward.1} parent=166 // pred_fallthru
          _
      $region167: #{hyperconv_forward.1} parent=5 // pred_fallthru
        _
    $region6: #{hyperconv_forward.1} parent=1 // loop_footer
      %s14 = sadd.s32 1, %s10
    $region7: #{hyperconv_forward.1} parent=1 // loop_footer_branch
      %9 = sbr.rel target = $region3
    $region8: #{hyperconv_forward.1} parent=1 // loop_exit
      _

</llo_original>
